<compile_context>
chip_gen: v7x
topology: tpu7x:2x2x1
jax: 0.10.0
libtpu: 0.0.40
codegen_flags: <defaults>
</compile_context>

<pallas_src>
import functools

import jax
import jax.numpy as jnp
import numpy as np
from jax.experimental import pallas as pl
from jax.experimental.pallas import tpu as pltpu

_LANE_W = 1024          # lane-dense slab width (multiple of 128)
_MAX_BLOCK_ROWS = 256   # 256 x 1024 f32 = 1 MiB per plane per block

_COMPILER_PARAMS = pltpu.CompilerParams(
    dimension_semantics=("parallel",),      # lets v7x shard the grid over its 2 TCs
    vmem_limit_bytes=32 * 1024 * 1024,      # headroom; <= physical on v5e/v6e/v7x
)


def _modrelu_complex_kernel(x_ref, o_ref, *, bias):
    # x_ref / o_ref blocks are (2, R, W): plane 0 = real, plane 1 = imag.
    xr = x_ref[0]
    xi = x_ref[1]
    mag2 = xr * xr + xi * xi
    inv = jax.lax.rsqrt(mag2)               # EUP slot (free next to VPU muls)
    mag = mag2 * inv                        # |z|
    # relu(|z| + b) / |z|  (|z| == 0 -> NaN output, matching torch's z / |z|)
    scale = jnp.maximum(mag + bias, 0.0) * inv
    o_ref[0] = scale * xr
    o_ref[1] = scale * xi


def _relu_kernel(x_ref, o_ref):
    o_ref[...] = jnp.maximum(x_ref[...], 0).astype(o_ref.dtype)


def _plan(n_elems, width, sublane, max_block_rows):
    """Pick (padded_rows, block_rows) for a (rows, width) slab of n_elems."""
    rows = -(-n_elems // width)
    block_rows = min(max_block_rows, -(-rows // sublane) * sublane)
    rows_padded = -(-rows // block_rows) * block_rows
    return rows_padded, block_rows


def modrelu(x: jnp.ndarray, bias: float, inplace: bool = False) -> jnp.ndarray:
    """JAX/Pallas equivalent of torchcomplex.nn.modReLU.forward."""
    del inplace  # TODO(synk): functional JAX has no in-place mutation; ignored.
    orig_shape = x.shape

    if jnp.issubdtype(x.dtype, jnp.complexfloating):
        xr = jnp.real(x).astype(jnp.float32).reshape(-1)
        xi = jnp.imag(x).astype(jnp.float32).reshape(-1)
        n = xr.shape[0]
        rows_padded, block_rows = _plan(n, _LANE_W, 8, _MAX_BLOCK_ROWS)
        pad = rows_padded * _LANE_W - n
        # One fused XLA pass: deinterleave + pad + stack -> (2, rows, W) slab.
        x_ri = jnp.stack(
            [jnp.pad(xr, (0, pad)), jnp.pad(xi, (0, pad))]
        ).reshape(2, rows_padded, _LANE_W)

        kern = functools.partial(_modrelu_complex_kernel, bias=float(bias))
        out = pl.pallas_call(
            kern,
            out_shape=jax.ShapeDtypeStruct((2, rows_padded, _LANE_W), jnp.float32),
            grid=(rows_padded // block_rows,),
            in_specs=[
                pl.BlockSpec((2, block_rows, _LANE_W), lambda i: (0, i, 0)),
            ],
            out_specs=pl.BlockSpec((2, block_rows, _LANE_W), lambda i: (0, i, 0)),
            compiler_params=_COMPILER_PARAMS,
        )(x_ri)

        out_r = out[0].reshape(-1)[:n].reshape(orig_shape)
        out_i = out[1].reshape(-1)[:n].reshape(orig_shape)
        return jax.lax.complex(out_r, out_i).astype(x.dtype)

    # Real path: plain ReLU (torchcomplex falls back to torch.relu).
    orig_dtype = x.dtype
    if orig_dtype == jnp.bfloat16:
        compute_dtype, sublane = jnp.bfloat16, 16   # keep bf16: half the HBM traffic
    else:
        compute_dtype, sublane = jnp.float32, 8
    xf = x.astype(compute_dtype).reshape(-1)
    n = xf.shape[0]
    rows_padded, block_rows = _plan(n, _LANE_W, sublane, _MAX_BLOCK_ROWS)
    x_s = jnp.pad(xf, (0, rows_padded * _LANE_W - n)).reshape(rows_padded, _LANE_W)

    out = pl.pallas_call(
        _relu_kernel,
        out_shape=jax.ShapeDtypeStruct((rows_padded, _LANE_W), compute_dtype),
        grid=(rows_padded // block_rows,),
        in_specs=[pl.BlockSpec((block_rows, _LANE_W), lambda i: (i, 0))],
        out_specs=pl.BlockSpec((block_rows, _LANE_W), lambda i: (i, 0)),
        compiler_params=_COMPILER_PARAMS,
    )(x_s)
    return out.reshape(-1)[:n].reshape(orig_shape).astype(orig_dtype)


class ModReLU:
    """Mirror of the torch module: bias is a plain (non-learned) scalar attribute."""

    def __init__(self, bias: float, inplace: bool = False):
        self.bias = bias
        self.inplace = inplace

    def __call__(self, x):
        return modrelu(x, bias=self.bias, inplace=self.inplace)


if __name__ == "__main__":
    key = jax.random.PRNGKey(0)
    kr, ki = jax.random.split(key)
    # NCHW complex input, small shapes
    shape = (2, 4, 16, 16)
    xr = jax.random.normal(kr, shape, dtype=jnp.float32)
    xi = jax.random.normal(ki, shape, dtype=jnp.float32)
    x = jax.lax.complex(xr, xi)  # complex64

    mod = ModReLU(bias=-0.5)
    out = jax.block_until_ready(mod(x))

    # Pure-JAX reference for correctness check
    mag = jnp.abs(x)
    ref = (jnp.maximum(mag + (-0.5), 0.0) / mag).astype(jnp.complex64) * x

    assert out.shape == x.shape and out.dtype == jnp.complex64
    np.testing.assert_allclose(np.asarray(out), np.asarray(ref), rtol=3e-5, atol=1e-5)

    # Real-input fallback path (plain ReLU), f32
    out_real = jax.block_until_ready(mod(xr))
    np.testing.assert_allclose(
        np.asarray(out_real), np.asarray(jnp.maximum(xr, 0.0)), rtol=1e-6, atol=1e-6
    )

    # Real-input fallback path, bf16 kept native in the kernel
    x_bf16 = xr.astype(jnp.bfloat16)
    out_bf16 = jax.block_until_ready(mod(x_bf16))
    assert out_bf16.dtype == jnp.bfloat16
    np.testing.assert_array_equal(
        np.asarray(out_bf16.astype(jnp.float32)),
        np.asarray(jnp.maximum(x_bf16, 0).astype(jnp.float32)),
    )

    print("KERNEL_OK")
</pallas_src>

<mosaic_0001>
module attributes {stable_mosaic.version = 11 : i64} {
  func.func @_modrelu_complex_kernel(%arg0: i32, %arg1: memref<2x8x1024xf32, #tpu.memory_space<vmem>>, %arg2: memref<2x8x1024xf32, #tpu.memory_space<vmem>>) attributes {dimension_semantics = [#tpu.dimension_semantics<parallel>], iteration_bounds = array<i64: 1>, scalar_prefetch = 0 : i64, scratch_operands = 0 : i64, tpu.core_type = #tpu.core_type<tc>, window_params = [{transform_indices = @transform_0, window_bounds = array<i64: 2, 8, 1024>}, {transform_indices = @transform_1, window_bounds = array<i64: 2, 8, 1024>}]} {
    %c0 = arith.constant 0 : index
    %c0_0 = arith.constant 0 : index
    %c0_1 = arith.constant 0 : index
    %0 = vector.load %arg1[%c0, %c0_0, %c0_1] : memref<2x8x1024xf32, #tpu.memory_space<vmem>>, vector<1x8x1024xf32>
    %1 = vector.shape_cast %0 : vector<1x8x1024xf32> to vector<8x1024xf32>
    %c1 = arith.constant 1 : index
    %c0_2 = arith.constant 0 : index
    %c0_3 = arith.constant 0 : index
    %2 = vector.load %arg1[%c1, %c0_2, %c0_3] : memref<2x8x1024xf32, #tpu.memory_space<vmem>>, vector<1x8x1024xf32>
    %3 = vector.shape_cast %2 : vector<1x8x1024xf32> to vector<8x1024xf32>
    %4 = arith.mulf %1, %1 : vector<8x1024xf32>
    %5 = arith.mulf %3, %3 : vector<8x1024xf32>
    %6 = arith.addf %4, %5 : vector<8x1024xf32>
    %7 = math.rsqrt %6 : vector<8x1024xf32>
    %8 = arith.mulf %6, %7 : vector<8x1024xf32>
    %cst = arith.constant -5.000000e-01 : f32
    %9 = vector.broadcast %cst : f32 to vector<8x1024xf32>
    %10 = arith.addf %8, %9 : vector<8x1024xf32>
    %cst_4 = arith.constant 0.000000e+00 : f32
    %11 = vector.broadcast %cst_4 : f32 to vector<8x1024xf32>
    %12 = arith.maximumf %10, %11 : vector<8x1024xf32>
    %13 = arith.mulf %12, %7 : vector<8x1024xf32>
    %14 = arith.mulf %13, %1 : vector<8x1024xf32>
    %c0_5 = arith.constant 0 : index
    %c0_6 = arith.constant 0 : index
    %c0_7 = arith.constant 0 : index
    %15 = vector.load %arg2[%c0_5, %c0_6, %c0_7] : memref<2x8x1024xf32, #tpu.memory_space<vmem>>, vector<1x8x1024xf32>
    %16 = vector.shape_cast %15 : vector<1x8x1024xf32> to vector<8x1024xf32>
    %17 = vector.shape_cast %14 : vector<8x1024xf32> to vector<1x8x1024xf32>
    tpu.vector_store %arg2[%c0_5, %c0_6, %c0_7], %17 {strides = array<i32>} : memref<2x8x1024xf32, #tpu.memory_space<vmem>>, vector<1x8x1024xf32>,
    %18 = arith.mulf %13, %3 : vector<8x1024xf32>
    %c1_8 = arith.constant 1 : index
    %c0_9 = arith.constant 0 : index
    %c0_10 = arith.constant 0 : index
    %19 = vector.load %arg2[%c1_8, %c0_9, %c0_10] : memref<2x8x1024xf32, #tpu.memory_space<vmem>>, vector<1x8x1024xf32>
    %20 = vector.shape_cast %19 : vector<1x8x1024xf32> to vector<8x1024xf32>
    %21 = vector.shape_cast %18 : vector<8x1024xf32> to vector<1x8x1024xf32>
    tpu.vector_store %arg2[%c1_8, %c0_9, %c0_10], %21 {strides = array<i32>} : memref<2x8x1024xf32, #tpu.memory_space<vmem>>, vector<1x8x1024xf32>,
    return
  }
  func.func @transform_0(%arg0: i32) -> (i32, i32, i32) {
    %c0_i32 = arith.constant 0 : i32
    %c0_i32_0 = arith.constant 0 : i32
    %c0_i32_1 = arith.constant 0 : i32
    return %c0_i32, %arg0, %c0_i32_0 : i32, i32, i32
  }
  func.func @transform_1(%arg0: i32) -> (i32, i32, i32) {
    %c0_i32 = arith.constant 0 : i32
    %c0_i32_0 = arith.constant 0 : i32
    %c0_i32_1 = arith.constant 0 : i32
    return %c0_i32, %arg0, %c0_i32_0 : i32, i32, i32
  }
}

</mosaic_0001>

<llo_original>
// kernel: tpu_custom_call.1
$region0: #{tpu_custom_call.1}
  #allocation0 [shape = 'u32[]', space=smem, size = 0x4, offset = 0x4, fixed_abs, tag = 'smem constant byte address 0x4 - core index']
  #allocation1 [shape = 'u32[144,128]{1,0:T(1,128)}', space=vmem, size = 0x12000, scoped, tag = 'internal scratch']
  %s0 = inlined_call_operand.hbm [shape: f32[2,8,1024], index: 0, kind: input, shape index: {}]
  %s1 = inlined_call_operand.hbm [shape: f32[2,8,1024], index: 1, kind: output, shape index: {}]
  %s2 = sld [smem:[#allocation0]]
  $region18: #{tpu_custom_call.1} parent=0
    _
  %s4 = ssub.s32 1, %s2
  %s5 = scalar_select 0, %s4, %s2
  $region1: #{tpu_custom_call.1} parent=0
    #allocation2 [shape = 'u8[65536]{0}', space=vmem, size = 0x10000, scoped, tag = 'input window, operand 0, single buffered']
    #allocation3 [shape = 's32[1]{0}', space=sflag, size = 0x4, scoped, tag = 'scoped memory for tpu_custom_call.1']
    #allocation4 [shape = 's32[1]{0}', space=sflag, size = 0x4, scoped, tag = 'scoped memory for tpu_custom_call.1']
    #allocation5 [shape = 'u8[65536]{0}', space=vmem, size = 0x10000, scoped, tag = 'output window, operand 0, single buffered']
    %6 = vsyncpa [#allocation3], 0
    %7 = vsyncpa [#allocation4], 0
    // Predicated region
    $region2: #{tpu_custom_call.1} parent=1 // pred_check
      _
    $region3: #{tpu_custom_call.1} parent=1 // pred_check_branch
      %9 = sbr.rel (0) target = $region5
    $region4: #{tpu_custom_call.1} parent=1 // pred_region
      %s11 = ssub.s32 2048, 2048
      %12 = vsyncadd [#allocation3], %s11
      %s13 = sshll.u32 [#allocation2], 4
      %s14 = int_to_ptr.vmem [resolvable:$true] %s13
      %19 = dma.hbm_to_vmem [thread:$0]  %s0, 2048, %s14, [#allocation3], 1024, 1024, 64
    $region5: #{tpu_custom_call.1} parent=1 // pred_fallthru
      _
    // Predicated region
    $region6: #{tpu_custom_call.1} parent=1 // pred_check
      _
    $region7: #{tpu_custom_call.1} parent=1 // pred_check_branch
      %21 = sbr.rel (0) target = $region9
    $region8: #{tpu_custom_call.1} parent=1 // pred_region
      %22 = dma.done [#allocation3], 2048
    $region9: #{tpu_custom_call.1} parent=1 // pred_fallthru
      _
    %v23 = vld [vmem:[#allocation2] sm:$0xff]
    %v24 = vld [vmem:[#allocation2 + $0x8] sm:$0xff]
    %v25 = vld [vmem:[#allocation2 + $0x10] sm:$0xff]
    %v26 = vld [vmem:[#allocation2 + $0x18] sm:$0xff]
    %v27 = vld [vmem:[#allocation2 + $0x20] sm:$0xff]
    %v28 = vld [vmem:[#allocation2 + $0x28] sm:$0xff]
    %v29 = vld [vmem:[#allocation2 + $0x30] sm:$0xff]
    %v30 = vld [vmem:[#allocation2 + $0x38] sm:$0xff]
    %s31 = scalar_lea.vmem [#allocation2], 64
    %v32 = vld [vmem:[%s31] sm:$0xff]
    %v33 = vld [vmem:[%s31 + $0x8] sm:$0xff]
    %v34 = vld [vmem:[%s31 + $0x10] sm:$0xff]
    %v35 = vld [vmem:[%s31 + $0x18] sm:$0xff]
    %v36 = vld [vmem:[%s31 + $0x20] sm:$0xff]
    %v37 = vld [vmem:[%s31 + $0x28] sm:$0xff]
    %v38 = vld [vmem:[%s31 + $0x30] sm:$0xff]
    %v39 = vld [vmem:[%s31 + $0x38] sm:$0xff]
    %v40 = vmul.f32 %v23, %v23
    %v41 = vmul.f32 %v24, %v24
    %v42 = vmul.f32 %v25, %v25
    %v43 = vmul.f32 %v26, %v26
    %v44 = vmul.f32 %v27, %v27
    %v45 = vmul.f32 %v28, %v28
    %v46 = vmul.f32 %v29, %v29
    %v47 = vmul.f32 %v30, %v30
    %v48 = vmul.f32 %v32, %v32
    %v49 = vmul.f32 %v33, %v33
    %v50 = vmul.f32 %v34, %v34
    %v51 = vmul.f32 %v35, %v35
    %v52 = vmul.f32 %v36, %v36
    %v53 = vmul.f32 %v37, %v37
    %v54 = vmul.f32 %v38, %v38
    %v55 = vmul.f32 %v39, %v39
    %v56 = vadd.f32 %v40, %v48
    %v57 = vadd.f32 %v41, %v49
    %v58 = vadd.f32 %v42, %v50
    %v59 = vadd.f32 %v43, %v51
    %v60 = vadd.f32 %v44, %v52
    %v61 = vadd.f32 %v45, %v53
    %v62 = vadd.f32 %v46, %v54
    %v63 = vadd.f32 %v47, %v55
    %v64 = vrsqrt.pop %v56
    %v65 = vrsqrt.pop %v57
    %v66 = vrsqrt.pop %v58
    %v67 = vrsqrt.pop %v59
    %v68 = vrsqrt.pop %v60
    %v69 = vrsqrt.pop %v61
    %v70 = vrsqrt.pop %v62
    %v71 = vrsqrt.pop %v63
    %v72 = vmul.f32 %v56, %v64
    %v73 = vmul.f32 %v57, %v65
    %v74 = vmul.f32 %v58, %v66
    %v75 = vmul.f32 %v59, %v67
    %v76 = vmul.f32 %v60, %v68
    %v77 = vmul.f32 %v61, %v69
    %v78 = vmul.f32 %v62, %v70
    %v79 = vmul.f32 %v63, %v71
    %v80 = vadd.f32 %v72, -0.5
    %v81 = vadd.f32 %v73, -0.5
    %v82 = vadd.f32 %v74, -0.5
    %v83 = vadd.f32 %v75, -0.5
    %v84 = vadd.f32 %v76, -0.5
    %v85 = vadd.f32 %v77, -0.5
    %v86 = vadd.f32 %v78, -0.5
    %v87 = vadd.f32 %v79, -0.5
    %v88 = vmax.f32 %v80, 0.0
    %v89 = vmax.f32 %v81, 0.0
    %v90 = vmax.f32 %v82, 0.0
    %v91 = vmax.f32 %v83, 0.0
    %v92 = vmax.f32 %v84, 0.0
    %v93 = vmax.f32 %v85, 0.0
    %v94 = vmax.f32 %v86, 0.0
    %v95 = vmax.f32 %v87, 0.0
    %v96 = vmul.f32 %v88, %v64
    %v97 = vmul.f32 %v89, %v65
    %v98 = vmul.f32 %v90, %v66
    %v99 = vmul.f32 %v91, %v67
    %v100 = vmul.f32 %v92, %v68
    %v101 = vmul.f32 %v93, %v69
    %v102 = vmul.f32 %v94, %v70
    %v103 = vmul.f32 %v95, %v71
    %v104 = vmul.f32 %v96, %v23
    %v105 = vmul.f32 %v97, %v24
    %v106 = vmul.f32 %v98, %v25
    %v107 = vmul.f32 %v99, %v26
    %v108 = vmul.f32 %v100, %v27
    %v109 = vmul.f32 %v101, %v28
    %v110 = vmul.f32 %v102, %v29
    %v111 = vmul.f32 %v103, %v30
    %112 = vst [vmem:[#allocation5] sm:$0xff] %v104
    %113 = vst [vmem:[#allocation5 + $0x8] sm:$0xff] %v105
    %114 = vst [vmem:[#allocation5 + $0x10] sm:$0xff] %v106
    %115 = vst [vmem:[#allocation5 + $0x18] sm:$0xff] %v107
    %116 = vst [vmem:[#allocation5 + $0x20] sm:$0xff] %v108
    %117 = vst [vmem:[#allocation5 + $0x28] sm:$0xff] %v109
    %118 = vst [vmem:[#allocation5 + $0x30] sm:$0xff] %v110
    %119 = vst [vmem:[#allocation5 + $0x38] sm:$0xff] %v111
    %v120 = vmul.f32 %v96, %v32
    %v121 = vmul.f32 %v97, %v33
    %v122 = vmul.f32 %v98, %v34
    %v123 = vmul.f32 %v99, %v35
    %v124 = vmul.f32 %v100, %v36
    %v125 = vmul.f32 %v101, %v37
    %v126 = vmul.f32 %v102, %v38
    %v127 = vmul.f32 %v103, %v39
    %s128 = scalar_lea.vmem [#allocation5], 64
    %129 = vst [vmem:[%s128] sm:$0xff] %v120
    %130 = vst [vmem:[%s128 + $0x8] sm:$0xff] %v121
    %131 = vst [vmem:[%s128 + $0x10] sm:$0xff] %v122
    %132 = vst [vmem:[%s128 + $0x18] sm:$0xff] %v123
    %133 = vst [vmem:[%s128 + $0x20] sm:$0xff] %v124
    %134 = vst [vmem:[%s128 + $0x28] sm:$0xff] %v125
    %135 = vst [vmem:[%s128 + $0x30] sm:$0xff] %v126
    %136 = vst [vmem:[%s128 + $0x38] sm:$0xff] %v127
    // Predicated region
    $region10: #{tpu_custom_call.1} parent=1 // pred_check
      _
    $region11: #{tpu_custom_call.1} parent=1 // pred_check_branch
      %138 = sbr.rel (0) target = $region13
    $region12: #{tpu_custom_call.1} parent=1 // pred_region
      %s140 = ssub.s32 2048, 2048
      %141 = vsyncadd [#allocation4], %s140
      %s142 = sshll.u32 [#allocation5], 4
      %s143 = int_to_ptr.vmem [resolvable:$true] %s142
      %148 = dma.vmem_to_hbm [thread:$0]  %s143, 2048, %s1, [#allocation4], 1024, 1024, 64
    $region13: #{tpu_custom_call.1} parent=1 // pred_fallthru
      _
    // Predicated region
    $region14: #{tpu_custom_call.1} parent=1 // pred_check
      _
    $region15: #{tpu_custom_call.1} parent=1 // pred_check_branch
      %150 = sbr.rel (0) target = $region17
    $region16: #{tpu_custom_call.1} parent=1 // pred_region
      %151 = dma.done [#allocation4], 2048
    $region17: #{tpu_custom_call.1} parent=1 // pred_fallthru
      _
    %152 = vsyncpa [#allocation3], 1
    %153 = vsyncpa [#allocation4], 1

</llo_original>
